<compile_context>
chip_gen: v6e
topology: v6e:2x2x1
jax: 0.10.0
libtpu: 0.0.40
codegen_flags: <defaults>
</compile_context>

<pallas_src>
import jax
import jax.numpy as jnp
from jax.experimental import pallas as pl
from jax.experimental.pallas import tpu as pltpu


def actor_kernel(x_ref, w1_ref, b1_ref, w2_ref, b2_ref, w3_ref, b3_ref, o_ref):
    # x arrives as f32; cast to the matmul dtype right before the MXU so the
    # wrapper never does a separate HBM cast pass over x.
    x = x_ref[...].astype(w1_ref.dtype)

    # Layer 1 + ReLU (MXU accumulates in f32; bias/ReLU in f32).
    h1 = jnp.dot(x, w1_ref[...], preferred_element_type=jnp.float32) + b1_ref[...]
    h1 = jnp.maximum(h1, 0.0)

    # Layer 2 + ReLU.
    h2 = jnp.dot(h1.astype(w2_ref.dtype), w2_ref[...],
                 preferred_element_type=jnp.float32) + b2_ref[...]
    h2 = jnp.maximum(h2, 0.0)

    # Layer 3 + softmax over the action (last) axis == torch softmax(dim=1).
    logits = jnp.dot(h2.astype(w3_ref.dtype), w3_ref[...],
                     preferred_element_type=jnp.float32) + b3_ref[...]
    m = jnp.max(logits, axis=1, keepdims=True)
    e = jnp.exp(logits - m)
    denom = jnp.sum(e, axis=1, keepdims=True)
    # Exact division: rows sum to 1 within f32 rounding (the approx reciprocal
    # previously violated the row-sum check).
    o_ref[...] = (e / denom).astype(o_ref.dtype)


def _round_up(n, m):
    return ((n + m - 1) // m) * m


def _cdiv(a, b):
    return -(-a // b)


def prepare_actor_params(params, compute_dtype=jnp.bfloat16):
    """Cast weight matrices once, outside the per-call path. Biases stay f32."""
    w1, b1, w2, b2, w3, b3 = params
    return (w1.astype(compute_dtype), b1.astype(jnp.float32),
            w2.astype(compute_dtype), b2.astype(jnp.float32),
            w3.astype(compute_dtype), b3.astype(jnp.float32))


def _batch_tiling(B, block_b, two_core_threshold):
    """Balanced batch tiles; grid kept even (>=2) for big batches (v7x 2 TCs)."""
    n_tiles = max(1, _cdiv(B, block_b))
    if B >= two_core_threshold:
        n_tiles = max(n_tiles, 2)
    if n_tiles > 1 and n_tiles % 2:
        n_tiles += 1
    tb = _round_up(_cdiv(B, n_tiles), 8)   # sublane-aligned
    return tb, n_tiles


def actor_forward(x, params, *, block_b=4096, two_core_threshold=512):
    """x: (B, number_of_state) f32 -> (B, number_of_action) f32 softmax probs.

    params = (w1, b1, w2, b2, w3, b3), weights stored (in, out). Weights may be
    bf16 (see prepare_actor_params); x stays f32 and is cast inside the kernel.
    """
    w1, b1, w2, b2, w3, b3 = params
    B, S = x.shape
    H = w1.shape[1]
    A = w3.shape[1]

    tb, n_tiles = _batch_tiling(B, block_b, two_core_threshold)
    b_pad = tb * n_tiles
    if b_pad != B:
        x = jnp.pad(x, ((0, b_pad - B), (0, 0)))

    const = lambda i: (0, 0)  # same block every step -> stays resident in VMEM

    out = pl.pallas_call(
        actor_kernel,
        out_shape=jax.ShapeDtypeStruct((b_pad, A), jnp.float32),
        grid=(n_tiles,),
        in_specs=[
            pl.BlockSpec((tb, S), lambda i: (i, 0)),  # x: tiled over batch
            pl.BlockSpec((S, H), const),
            pl.BlockSpec((1, H), const),
            pl.BlockSpec((H, H), const),
            pl.BlockSpec((1, H), const),
            pl.BlockSpec((H, A), const),
            pl.BlockSpec((1, A), const),
        ],
        out_specs=pl.BlockSpec((tb, A), lambda i: (i, 0)),
        compiler_params=pltpu.CompilerParams(
            # Independent batch tiles -> may shard across v7x's 2 TensorCores.
            dimension_semantics=("parallel",),
            # Safe for tb<=4096 even with 128-lane padding; v7x has 64 MiB VMEM.
            vmem_limit_bytes=32 * 1024 * 1024,
        ),
    )(x, w1, b1, w2, b2, w3, b3)

    return out[:B]


def init_linear(key, fan_in, fan_out):
    """Matches torch.nn.Linear default init: U(-1/sqrt(fan_in), 1/sqrt(fan_in))."""
    kw, kb = jax.random.split(key)
    bound = 1.0 / jnp.sqrt(jnp.float32(fan_in))
    w = jax.random.uniform(kw, (fan_in, fan_out), jnp.float32, -bound, bound)
    b = jax.random.uniform(kb, (1, fan_out), jnp.float32, -bound, bound)
    return w, b


def _reference(x, params):
    w1, b1, w2, b2, w3, b3 = params
    h1 = jnp.maximum(x @ w1 + b1, 0.0)
    h2 = jnp.maximum(h1 @ w2 + b2, 0.0)
    return jax.nn.softmax(h2 @ w3 + b3, axis=1)


# TODO(synk): getActionAndProb/getProb (Categorical sampling + log_prob) are not
# implemented; only the forward pass is kernelized.

if __name__ == "__main__":
    number_of_state = 16
    number_of_action = 4
    hidden_size = 32
    batch = 8

    key = jax.random.PRNGKey(0)
    k1, k2, k3, kx, kx2 = jax.random.split(key, 5)
    w1, b1 = init_linear(k1, number_of_state, hidden_size)
    w2, b2 = init_linear(k2, hidden_size, hidden_size)
    w3, b3 = init_linear(k3, hidden_size, number_of_action)
    params_f32 = (w1, b1, w2, b2, w3, b3)
    # bf16 weights are prepared once (not per forward call).
    params_bf16 = prepare_actor_params(params_f32, jnp.bfloat16)

    x = jax.random.normal(kx, (batch, number_of_state), jnp.float32)
    ref = _reference(x, params_f32)

    # 1) Full-f32 path: tight check; softmax rows must sum to ~1 exactly.
    out_f32 = jax.block_until_ready(actor_forward(x, params_f32))
    assert out_f32.shape == (batch, number_of_action)
    assert jnp.allclose(out_f32, ref, atol=2e-3, rtol=2e-3)
    assert jnp.allclose(jnp.sum(out_f32, axis=1), 1.0, atol=1e-3)

    # 2) bf16-weight path (f32 accumulation + f32 softmax): looser value check,
    #    but normalization is still exact.
    out_bf16 = jax.block_until_ready(actor_forward(x, params_bf16))
    assert out_bf16.shape == (batch, number_of_action)
    assert jnp.allclose(out_bf16, ref, atol=3e-2, rtol=3e-2)
    assert jnp.allclose(jnp.sum(out_bf16, axis=1), 1.0, atol=1e-3)

    # 3) Larger, non-multiple batch exercises the multi-tile grid + padding path
    #    (B=1000 -> 2 balanced tiles of 504 rows, 8 padded rows sliced off).
    xb = jax.random.normal(kx2, (1000, number_of_state), jnp.float32)
    refb = _reference(xb, params_f32)
    outb = jax.block_until_ready(actor_forward(xb, params_bf16))
    assert outb.shape == (1000, number_of_action)
    assert jnp.allclose(outb, refb, atol=3e-2, rtol=3e-2)
    assert jnp.allclose(jnp.sum(outb, axis=1), 1.0, atol=1e-3)

    print("KERNEL_OK")
</pallas_src>

<mosaic_0001>
module attributes {stable_mosaic.version = 11 : i64} {
  func.func @actor_kernel(%arg0: i32, %arg1: memref<8x16xf32, #tpu.memory_space<vmem>>, %arg2: memref<16x32xf32, #tpu.memory_space<vmem>>, %arg3: memref<1x32xf32, #tpu.memory_space<vmem>>, %arg4: memref<32x32xf32, #tpu.memory_space<vmem>>, %arg5: memref<1x32xf32, #tpu.memory_space<vmem>>, %arg6: memref<32x4xf32, #tpu.memory_space<vmem>>, %arg7: memref<1x4xf32, #tpu.memory_space<vmem>>, %arg8: memref<8x4xf32, #tpu.memory_space<vmem>>) attributes {dimension_semantics = [#tpu.dimension_semantics<parallel>], iteration_bounds = array<i64: 1>, scalar_prefetch = 0 : i64, scratch_operands = 0 : i64, tpu.core_type = #tpu.core_type<tc>, window_params = [{transform_indices = @transform_0, window_bounds = array<i64: 8, 16>}, {pipeline_mode = #tpu.pipeline_mode<synchronous>, transform_indices = @transform_1, window_bounds = array<i64: 16, 32>}, {pipeline_mode = #tpu.pipeline_mode<synchronous>, transform_indices = @transform_2, window_bounds = array<i64: 1, 32>}, {pipeline_mode = #tpu.pipeline_mode<synchronous>, transform_indices = @transform_3, window_bounds = array<i64: 32, 32>}, {pipeline_mode = #tpu.pipeline_mode<synchronous>, transform_indices = @transform_4, window_bounds = array<i64: 1, 32>}, {pipeline_mode = #tpu.pipeline_mode<synchronous>, transform_indices = @transform_5, window_bounds = array<i64: 32, 4>}, {pipeline_mode = #tpu.pipeline_mode<synchronous>, transform_indices = @transform_6, window_bounds = array<i64: 1, 4>}, {transform_indices = @transform_7, window_bounds = array<i64: 8, 4>}]} {
    %c0 = arith.constant 0 : index
    %c0_0 = arith.constant 0 : index
    %0 = vector.load %arg1[%c0, %c0_0] : memref<8x16xf32, #tpu.memory_space<vmem>>, vector<8x16xf32>
    %c0_1 = arith.constant 0 : index
    %c0_2 = arith.constant 0 : index
    %1 = vector.load %arg2[%c0_1, %c0_2] : memref<16x32xf32, #tpu.memory_space<vmem>>, vector<16x32xf32>
    %cst = arith.constant dense<0.000000e+00> : vector<8x32xf32>
    %2 = tpu.matmul %0, %1, %cst {dimension_numbers = #tpu.dot_dimension_numbers<[1], [0], [0], [1], [0, 0, 1, 1], [], []>} : vector<8x16xf32>, vector<16x32xf32>, vector<8x32xf32> -> vector<8x32xf32>
    %c0_3 = arith.constant 0 : index
    %c0_4 = arith.constant 0 : index
    %3 = vector.load %arg3[%c0_3, %c0_4] : memref<1x32xf32, #tpu.memory_space<vmem>>, vector<1x32xf32>
    %4 = vector.broadcast %3 : vector<1x32xf32> to vector<8x32xf32>
    %5 = arith.addf %2, %4 : vector<8x32xf32>
    %cst_5 = arith.constant 0.000000e+00 : f32
    %6 = vector.broadcast %cst_5 : f32 to vector<8x32xf32>
    %7 = arith.maximumf %5, %6 : vector<8x32xf32>
    %c0_6 = arith.constant 0 : index
    %c0_7 = arith.constant 0 : index
    %8 = vector.load %arg4[%c0_6, %c0_7] : memref<32x32xf32, #tpu.memory_space<vmem>>, vector<32x32xf32>
    %cst_8 = arith.constant dense<0.000000e+00> : vector<8x32xf32>
    %9 = tpu.matmul %7, %8, %cst_8 {dimension_numbers = #tpu.dot_dimension_numbers<[1], [0], [0], [1], [0, 0, 1, 1], [], []>} : vector<8x32xf32>, vector<32x32xf32>, vector<8x32xf32> -> vector<8x32xf32>
    %c0_9 = arith.constant 0 : index
    %c0_10 = arith.constant 0 : index
    %10 = vector.load %arg5[%c0_9, %c0_10] : memref<1x32xf32, #tpu.memory_space<vmem>>, vector<1x32xf32>
    %11 = vector.broadcast %10 : vector<1x32xf32> to vector<8x32xf32>
    %12 = arith.addf %9, %11 : vector<8x32xf32>
    %cst_11 = arith.constant 0.000000e+00 : f32
    %13 = vector.broadcast %cst_11 : f32 to vector<8x32xf32>
    %14 = arith.maximumf %12, %13 : vector<8x32xf32>
    %c0_12 = arith.constant 0 : index
    %c0_13 = arith.constant 0 : index
    %15 = vector.load %arg6[%c0_12, %c0_13] : memref<32x4xf32, #tpu.memory_space<vmem>>, vector<32x4xf32>
    %cst_14 = arith.constant dense<0.000000e+00> : vector<8x4xf32>
    %16 = tpu.matmul %14, %15, %cst_14 {dimension_numbers = #tpu.dot_dimension_numbers<[1], [0], [0], [1], [0, 0, 1, 1], [], []>} : vector<8x32xf32>, vector<32x4xf32>, vector<8x4xf32> -> vector<8x4xf32>
    %c0_15 = arith.constant 0 : index
    %c0_16 = arith.constant 0 : index
    %17 = vector.load %arg7[%c0_15, %c0_16] : memref<1x4xf32, #tpu.memory_space<vmem>>, vector<1x4xf32>
    %18 = vector.broadcast %17 : vector<1x4xf32> to vector<8x4xf32>
    %19 = arith.addf %16, %18 : vector<8x4xf32>
    %cst_17 = arith.constant dense<0xFF800000> : vector<8xf32>
    %20 = vector.multi_reduction <maximumf>, %19, %cst_17 [1] : vector<8x4xf32> to vector<8xf32>
    %21 = vector.shape_cast %20 : vector<8xf32> to vector<8x1xf32>
    %22 = vector.broadcast %21 : vector<8x1xf32> to vector<8x4xf32>
    %23 = arith.subf %19, %22 : vector<8x4xf32>
    %24 = math.exp %23 : vector<8x4xf32>
    %cst_18 = arith.constant dense<0.000000e+00> : vector<8xf32>
    %25 = vector.multi_reduction <add>, %24, %cst_18 [1] : vector<8x4xf32> to vector<8xf32>
    %26 = vector.shape_cast %25 : vector<8xf32> to vector<8x1xf32>
    %27 = vector.broadcast %26 : vector<8x1xf32> to vector<8x4xf32>
    %28 = arith.divf %24, %27 : vector<8x4xf32>
    %c0_19 = arith.constant 0 : index
    %c0_20 = arith.constant 0 : index
    %29 = vector.load %arg8[%c0_19, %c0_20] : memref<8x4xf32, #tpu.memory_space<vmem>>, vector<8x4xf32>
    tpu.vector_store %arg8[%c0_19, %c0_20], %28 {strides = array<i32>} : memref<8x4xf32, #tpu.memory_space<vmem>>, vector<8x4xf32>,
    return
  }
  func.func @transform_0(%arg0: i32) -> (i32, i32) {
    %c0_i32 = arith.constant 0 : i32
    %c0_i32_0 = arith.constant 0 : i32
    return %arg0, %c0_i32 : i32, i32
  }
  func.func @transform_1(%arg0: i32) -> (i32, i32) {
    %c0_i32 = arith.constant 0 : i32
    %c0_i32_0 = arith.constant 0 : i32
    %c0_i32_1 = arith.constant 0 : i32
    return %c0_i32, %c0_i32_0 : i32, i32
  }
  func.func @transform_2(%arg0: i32) -> (i32, i32) {
    %c0_i32 = arith.constant 0 : i32
    %c0_i32_0 = arith.constant 0 : i32
    %c0_i32_1 = arith.constant 0 : i32
    return %c0_i32, %c0_i32_0 : i32, i32
  }
  func.func @transform_3(%arg0: i32) -> (i32, i32) {
    %c0_i32 = arith.constant 0 : i32
    %c0_i32_0 = arith.constant 0 : i32
    %c0_i32_1 = arith.constant 0 : i32
    return %c0_i32, %c0_i32_0 : i32, i32
  }
  func.func @transform_4(%arg0: i32) -> (i32, i32) {
    %c0_i32 = arith.constant 0 : i32
    %c0_i32_0 = arith.constant 0 : i32
    %c0_i32_1 = arith.constant 0 : i32
    return %c0_i32, %c0_i32_0 : i32, i32
  }
  func.func @transform_5(%arg0: i32) -> (i32, i32) {
    %c0_i32 = arith.constant 0 : i32
    %c0_i32_0 = arith.constant 0 : i32
    %c0_i32_1 = arith.constant 0 : i32
    return %c0_i32, %c0_i32_0 : i32, i32
  }
  func.func @transform_6(%arg0: i32) -> (i32, i32) {
    %c0_i32 = arith.constant 0 : i32
    %c0_i32_0 = arith.constant 0 : i32
    %c0_i32_1 = arith.constant 0 : i32
    return %c0_i32, %c0_i32_0 : i32, i32
  }
  func.func @transform_7(%arg0: i32) -> (i32, i32) {
    %c0_i32 = arith.constant 0 : i32
    %c0_i32_0 = arith.constant 0 : i32
    return %arg0, %c0_i32 : i32, i32
  }
}

</mosaic_0001>

<llo_original>
// kernel: tpu_custom_call.1
$region0: #{tpu_custom_call.1}
  #allocation0 [shape = 'u32[]', space=smem, size = 0x4, offset = 0x4, fixed_abs, tag = 'smem constant byte address 0x4 - core index']
  #allocation1 [shape = 'u32[144,128]{1,0:T(1,128)}', space=vmem, size = 0x12000, scoped, tag = 'internal scratch']
  %s0 = inlined_call_operand.vmem [shape: f32[8,16], index: 0, kind: input, shape index: {}]
  %s1 = inlined_call_operand.hbm [shape: f32[16,32], index: 1, kind: input, shape index: {}]
  %s2 = inlined_call_operand.vmem [shape: f32[1,32], index: 2, kind: input, shape index: {}]
  %s3 = inlined_call_operand.vmem [shape: f32[32,32], index: 3, kind: input, shape index: {}]
  %s4 = inlined_call_operand.hbm [shape: f32[1,32], index: 4, kind: input, shape index: {}]
  %s5 = inlined_call_operand.vmem [shape: f32[32,4], index: 5, kind: input, shape index: {}]
  %s6 = inlined_call_operand.vmem [shape: f32[1,4], index: 6, kind: input, shape index: {}]
  %s7 = inlined_call_operand.vmem [shape: f32[8,4], index: 7, kind: output, shape index: {}]
  %s8 = sld [smem:[#allocation0]]
  $region46: #{tpu_custom_call.1} parent=0
    _
  %s10 = ssub.s32 1, %s8
  %s11 = scalar_select 0, %s10, %s8
  $region1: #{tpu_custom_call.1} parent=0
    #allocation2 [shape = 'u8[8192]{0}', space=vmem, size = 0x2000, scoped, tag = 'input window, operand 1, single buffered']
    #allocation3 [shape = 's32[1]{0}', space=sflag, size = 0x4, scoped, tag = 'scoped memory for tpu_custom_call.1']
    #allocation4 [shape = 'u8[512]{0}', space=vmem, size = 0x400, scoped, tag = 'input window, operand 4, single buffered']
    #allocation5 [shape = 's32[1]{0}', space=sflag, size = 0x4, scoped, tag = 'scoped memory for tpu_custom_call.1']
    %12 = vsyncpa [#allocation3], 0
    %13 = vsyncpa [#allocation5], 0
    // Predicated region
    $region2: #{tpu_custom_call.1} parent=1 // pred_check
      _
    $region3: #{tpu_custom_call.1} parent=1 // pred_check_branch
      %15 = sbr.rel (0) target = $region5
    $region4: #{tpu_custom_call.1} parent=1 // pred_region
      _
    $region5: #{tpu_custom_call.1} parent=1 // pred_fallthru
      _
    // Predicated region
    $region6: #{tpu_custom_call.1} parent=1 // pred_check
      _
    $region7: #{tpu_custom_call.1} parent=1 // pred_check_branch
      %17 = sbr.rel (0) target = $region9
    $region8: #{tpu_custom_call.1} parent=1 // pred_region
      %s19 = ssub.s32 256, 256
      %20 = vsyncadd [#allocation3], %s19
      %s21 = sshll.u32 [#allocation2], 4
      %s22 = int_to_ptr.vmem [resolvable:$true] %s21
      %27 = dma.hbm_to_vmem [thread:$0]  %s1, 256, %s22, [#allocation3], 128, 128, 8
    $region9: #{tpu_custom_call.1} parent=1 // pred_fallthru
      _
    // Predicated region
    $region10: #{tpu_custom_call.1} parent=1 // pred_check
      _
    $region11: #{tpu_custom_call.1} parent=1 // pred_check_branch
      %29 = sbr.rel (0) target = $region13
    $region12: #{tpu_custom_call.1} parent=1 // pred_region
      _
    $region13: #{tpu_custom_call.1} parent=1 // pred_fallthru
      _
    // Predicated region
    $region14: #{tpu_custom_call.1} parent=1 // pred_check
      _
    $region15: #{tpu_custom_call.1} parent=1 // pred_check_branch
      %31 = sbr.rel (0) target = $region17
    $region16: #{tpu_custom_call.1} parent=1 // pred_region
      _
    $region17: #{tpu_custom_call.1} parent=1 // pred_fallthru
      _
    // Predicated region
    $region18: #{tpu_custom_call.1} parent=1 // pred_check
      _
    $region19: #{tpu_custom_call.1} parent=1 // pred_check_branch
      %33 = sbr.rel (0) target = $region21
    $region20: #{tpu_custom_call.1} parent=1 // pred_region
      %s35 = ssub.s32 16, 16
      %36 = vsyncadd [#allocation5], %s35
      %s38 = sshll.u32 [#allocation4], 4
      %s39 = int_to_ptr.vmem [resolvable:$true] %s38
      %41 = dma.hbm_to_vmem [thread:$0]  %s4, 16, %s39, [#allocation5]
    $region21: #{tpu_custom_call.1} parent=1 // pred_fallthru
      _
    // Predicated region
    $region22: #{tpu_custom_call.1} parent=1 // pred_check
      _
    $region23: #{tpu_custom_call.1} parent=1 // pred_check_branch
      %43 = sbr.rel (0) target = $region25
    $region24: #{tpu_custom_call.1} parent=1 // pred_region
      _
    $region25: #{tpu_custom_call.1} parent=1 // pred_fallthru
      _
    // Predicated region
    $region26: #{tpu_custom_call.1} parent=1 // pred_check
      _
    $region27: #{tpu_custom_call.1} parent=1 // pred_check_branch
      %45 = sbr.rel (0) target = $region29
    $region28: #{tpu_custom_call.1} parent=1 // pred_region
      _
    $region29: #{tpu_custom_call.1} parent=1 // pred_fallthru
      _
    // Predicated region
    $region30: #{tpu_custom_call.1} parent=1 // pred_check
      _
    $region31: #{tpu_custom_call.1} parent=1 // pred_check_branch
      %47 = sbr.rel (0) target = $region33
    $region32: #{tpu_custom_call.1} parent=1 // pred_region
      %48 = dma.done [#allocation3], 256
    $region33: #{tpu_custom_call.1} parent=1 // pred_fallthru
      _
    // Predicated region
    $region34: #{tpu_custom_call.1} parent=1 // pred_check
      _
    $region35: #{tpu_custom_call.1} parent=1 // pred_check_branch
      %50 = sbr.rel (0) target = $region37
    $region36: #{tpu_custom_call.1} parent=1 // pred_region
      %51 = dma.done [#allocation5], 16
    $region37: #{tpu_custom_call.1} parent=1 // pred_fallthru
      _
    %v52 = vld [vmem:[%s0] sm:$0xff]
    %v53 = vld [vmem:[#allocation2] sm:$0xff]
    %v54 = vld [vmem:[#allocation2 + $0x8] sm:$0xff]
    %v55 = vld [vmem:[%s2] sm:$0x1]
    %v57 = vlaneseq
    %v58 = vshrl.u32 %v57, 7
    %v59 = vsub.s32 0, %v58
    %v60 = vrot.slane %v55, %v59
    %vm62 = vcmask 130048
    %v64 = vsel %vm62, %v52, 0
    %66 = vmatprep.subr.mxu0 0.0
    %67 = vmatpush1.msra.mxu0 0.0
    %68 = vmatprep.subr.mxu0 0.0
    %69 = vmatpush1.msra.mxu0 0.0
    %70 = vmatprep.subr.mxu0 0.0
    %71 = vmatpush1.msra.mxu0 0.0
    %72 = vmatprep.subr.mxu0 0.0
    %73 = vmatpush1.msra.mxu0 0.0
    %74 = vmatprep.subr.mxu0 0.0
    %75 = vmatpush1.msra.mxu0 0.0
    %76 = vmatprep.subr.mxu0 0.0
    %77 = vmatpush1.msra.mxu0 0.0
    %78 = vmatprep.subr.mxu0 0.0
    %79 = vmatpush1.msra.mxu0 0.0
    %80 = vmatprep.subr.mxu0 0.0
    %81 = vmatpush1.msra.mxu0 0.0
    %82 = vmatprep.subr.mxu0 0.0
    %83 = vmatpush1.msra.mxu0 0.0
    %84 = vmatprep.subr.mxu0 0.0
    %85 = vmatpush1.msra.mxu0 0.0
    %86 = vmatprep.subr.mxu0 0.0
    %87 = vmatpush1.msra.mxu0 0.0
    %88 = vmatprep.subr.mxu0 0.0
    %89 = vmatpush1.msra.mxu0 0.0
    %90 = vmatprep.subr.mxu0 0.0
    %91 = vmatpush1.msra.mxu0 0.0
    %92 = vmatprep.subr.mxu0 0.0
    %93 = vmatpush1.msra.mxu0 0.0
    %94 = vmatprep.subr.mxu0 0.0
    %95 = vmatpush1.msra.mxu0 %v54
    %96 = vmatprep.subr.mxu0 0.0
    %97 = vmatpush1.msra.mxu0 %v53
    %98 = vmatprep.subr.mxu0 0.0
    %99 = vmatpush2.msra.mxu0 0.0
    %100 = vmatprep.subr.mxu0 0.0
    %101 = vmatpush2.msra.mxu0 0.0
    %102 = vmatprep.subr.mxu0 0.0
    %103 = vmatpush2.msra.mxu0 0.0
    %104 = vmatprep.subr.mxu0 0.0
    %105 = vmatpush2.msra.mxu0 0.0
    %106 = vmatprep.subr.mxu0 0.0
    %107 = vmatpush2.msra.mxu0 0.0
    %108 = vmatprep.subr.mxu0 0.0
    %109 = vmatpush2.msra.mxu0 0.0
    %110 = vmatprep.subr.mxu0 0.0
    %111 = vmatpush2.msra.mxu0 0.0
    %112 = vmatprep.subr.mxu0 0.0
    %113 = vmatpush2.msra.mxu0 0.0
    %114 = vmatprep.subr.mxu0 0.0
    %115 = vmatpush2.msra.mxu0 0.0
    %116 = vmatprep.subr.mxu0 0.0
    %117 = vmatpush2.msra.mxu0 0.0
    %118 = vmatprep.subr.mxu0 0.0
    %119 = vmatpush2.msra.mxu0 0.0
    %120 = vmatprep.subr.mxu0 0.0
    %121 = vmatpush2.msra.mxu0 0.0
    %122 = vmatprep.subr.mxu0 0.0
    %123 = vmatpush2.msra.mxu0 0.0
    %124 = vmatprep.subr.mxu0 0.0
    %125 = vmatpush2.msra.mxu0 0.0
    %126 = vmatprep.subr.mxu0 0.0
    %127 = vmatpush2.msra.mxu0 0.0
    %128 = vmatprep.subr.mxu0 0.0
    %129 = vmatpush2.msra.mxu0 0.0
    %130 = vmatprep.mubr.f32.mxu0 0.0
    %131 = vmatmul.mubr.f32.gmra.mxu0 %v64
    %v132 = vpop.f32.mrf.mxu0
    %v133 = vadd.f32 %v60, %v132
    %v134 = vpop.f32.mrf.mxu0
    %135 = vdwg.mxu0
    %v136 = vmax.f32 %v133, 0.0
    %v137 = vld [vmem:[%s3] sm:$0xff]
    %v138 = vld [vmem:[%s3 + $0x8] sm:$0xff]
    %v139 = vld [vmem:[%s3 + $0x10] sm:$0xff]
    %v140 = vld [vmem:[%s3 + $0x18] sm:$0xff]
    %v141 = vld [vmem:[#allocation4] sm:$0x1]
    %v143 = vlaneseq
    %v144 = vshrl.u32 %v143, 7
    %v145 = vsub.s32 0, %v144
    %v146 = vrot.slane %v141, %v145
    %vm148 = vcmask 261120
    %v150 = vsel %vm148, %v136, 0
    %152 = vmatprep.subr.mxu0 0.0
    %153 = vmatpush1.msra.mxu0 0.0
    %154 = vmatprep.subr.mxu0 0.0
    %155 = vmatpush1.msra.mxu0 0.0
    %156 = vmatprep.subr.mxu0 0.0
    %157 = vmatpush1.msra.mxu0 0.0
    %158 = vmatprep.subr.mxu0 0.0
    %159 = vmatpush1.msra.mxu0 0.0
    %160 = vmatprep.subr.mxu0 0.0
    %161 = vmatpush1.msra.mxu0 0.0
    %162 = vmatprep.subr.mxu0 0.0
    %163 = vmatpush1.msra.mxu0 0.0
    %164 = vmatprep.subr.mxu0 0.0
    %165 = vmatpush1.msra.mxu0 0.0
    %166 = vmatprep.subr.mxu0 0.0
    %167 = vmatpush1.msra.mxu0 0.0
    %168 = vmatprep.subr.mxu0 0.0
    %169 = vmatpush1.msra.mxu0 0.0
    %170 = vmatprep.subr.mxu0 0.0
    %171 = vmatpush1.msra.mxu0 0.0
    %172 = vmatprep.subr.mxu0 0.0
    %173 = vmatpush1.msra.mxu0 0.0
    %174 = vmatprep.subr.mxu0 0.0
    %175 = vmatpush1.msra.mxu0 0.0
    %176 = vmatprep.subr.mxu0 0.0
    %177 = vmatpush1.msra.mxu0 %v140
    %178 = vmatprep.subr.mxu0 0.0
    %179 = vmatpush1.msra.mxu0 %v139
    %180 = vmatprep.subr.mxu0 0.0
    %181 = vmatpush1.msra.mxu0 %v138
    %182 = vmatprep.subr.mxu0 0.0
    %183 = vmatpush1.msra.mxu0 %v137
    %184 = vmatprep.subr.mxu0 0.0
    %185 = vmatpush2.msra.mxu0 0.0
    %186 = vmatprep.subr.mxu0 0.0
    %187 = vmatpush2.msra.mxu0 0.0
    %188 = vmatprep.subr.mxu0 0.0
    %189 = vmatpush2.msra.mxu0 0.0
    %190 = vmatprep.subr.mxu0 0.0
    %191 = vmatpush2.msra.mxu0 0.0
    %192 = vmatprep.subr.mxu0 0.0
    %193 = vmatpush2.msra.mxu0 0.0
    %194 = vmatprep.subr.mxu0 0.0
    %195 = vmatpush2.msra.mxu0 0.0
    %196 = vmatprep.subr.mxu0 0.0
    %197 = vmatpush2.msra.mxu0 0.0
    %198 = vmatprep.subr.mxu0 0.0
    %199 = vmatpush2.msra.mxu0 0.0
    %200 = vmatprep.subr.mxu0 0.0
    %201 = vmatpush2.msra.mxu0 0.0
    %202 = vmatprep.subr.mxu0 0.0
    %203 = vmatpush2.msra.mxu0 0.0
    %204 = vmatprep.subr.mxu0 0.0
    %205 = vmatpush2.msra.mxu0 0.0
    %206 = vmatprep.subr.mxu0 0.0
    %207 = vmatpush2.msra.mxu0 0.0
    %208 = vmatprep.subr.mxu0 0.0
    %209 = vmatpush2.msra.mxu0 0.0
    %210 = vmatprep.subr.mxu0 0.0
    %211 = vmatpush2.msra.mxu0 0.0
    %212 = vmatprep.subr.mxu0 0.0
    %213 = vmatpush2.msra.mxu0 0.0
    %214 = vmatprep.subr.mxu0 0.0
    %215 = vmatpush2.msra.mxu0 0.0
    %216 = vmatprep.mubr.f32.mxu0 0.0
    %217 = vmatmul.mubr.f32.gmra.mxu0 %v150
    %v218 = vpop.f32.mrf.mxu0
    %v219 = vadd.f32 %v146, %v218
    %v220 = vpop.f32.mrf.mxu0
    %221 = vdwg.mxu0
    %v222 = vmax.f32 %v219, 0.0
    %v223 = vld [vmem:[%s5] sm:$0xff]
    %v224 = vld [vmem:[%s5 + $0x8] sm:$0xff]
    %v225 = vld [vmem:[%s5 + $0x10] sm:$0xff]
    %v226 = vld [vmem:[%s5 + $0x18] sm:$0xff]
    %v227 = vld [vmem:[%s6] sm:$0x1]
    %v229 = vlaneseq
    %v230 = vshrl.u32 %v229, 7
    %v231 = vsub.s32 0, %v230
    %v232 = vrot.slane %v227, %v231
    %v235 = vsel %vm148, %v222, 0
    %237 = vmatprep.subr.mxu0 0.0
    %238 = vmatpush1.msra.mxu0 0.0
    %239 = vmatprep.subr.mxu0 0.0
    %240 = vmatpush1.msra.mxu0 0.0
    %241 = vmatprep.subr.mxu0 0.0
    %242 = vmatpush1.msra.mxu0 0.0
    %243 = vmatprep.subr.mxu0 0.0
    %244 = vmatpush1.msra.mxu0 0.0
    %245 = vmatprep.subr.mxu0 0.0
    %246 = vmatpush1.msra.mxu0 0.0
    %247 = vmatprep.subr.mxu0 0.0
    %248 = vmatpush1.msra.mxu0 0.0
    %249 = vmatprep.subr.mxu0 0.0
    %250 = vmatpush1.msra.mxu0 0.0
    %251 = vmatprep.subr.mxu0 0.0
    %252 = vmatpush1.msra.mxu0 0.0
    %253 = vmatprep.subr.mxu0 0.0
    %254 = vmatpush1.msra.mxu0 0.0
    %255 = vmatprep.subr.mxu0 0.0
    %256 = vmatpush1.msra.mxu0 0.0
    %257 = vmatprep.subr.mxu0 0.0
    %258 = vmatpush1.msra.mxu0 0.0
    %259 = vmatprep.subr.mxu0 0.0
    %260 = vmatpush1.msra.mxu0 0.0
    %261 = vmatprep.subr.mxu0 0.0
    %262 = vmatpush1.msra.mxu0 %v226
    %263 = vmatprep.subr.mxu0 0.0
    %264 = vmatpush1.msra.mxu0 %v225
    %265 = vmatprep.subr.mxu0 0.0
    %266 = vmatpush1.msra.mxu0 %v224
    %267 = vmatprep.subr.mxu0 0.0
    %268 = vmatpush1.msra.mxu0 %v223
    %269 = vmatprep.subr.mxu0 0.0
    %270 = vmatpush2.msra.mxu0 0.0
    %271 = vmatprep.subr.mxu0 0.0
    %272 = vmatpush2.msra.mxu0 0.0
    %273 = vmatprep.subr.mxu0 0.0
    %274 = vmatpush2.msra.mxu0 0.0
    %275 = vmatprep.subr.mxu0 0.0
    %276 = vmatpush2.msra.mxu0 0.0
    %277 = vmatprep.subr.mxu0 0.0
    %278 = vmatpush2.msra.mxu0 0.0
    %279 = vmatprep.subr.mxu0 0.0
    %280 = vmatpush2.msra.mxu0 0.0
    %281 = vmatprep.subr.mxu0 0.0
    %282 = vmatpush2.msra.mxu0 0.0
    %283 = vmatprep.subr.mxu0 0.0
    %284 = vmatpush2.msra.mxu0 0.0
    %285 = vmatprep.subr.mxu0 0.0
    %286 = vmatpush2.msra.mxu0 0.0
    %287 = vmatprep.subr.mxu0 0.0
    %288 = vmatpush2.msra.mxu0 0.0
    %289 = vmatprep.subr.mxu0 0.0
    %290 = vmatpush2.msra.mxu0 0.0
    %291 = vmatprep.subr.mxu0 0.0
    %292 = vmatpush2.msra.mxu0 0.0
    %293 = vmatprep.subr.mxu0 0.0
    %294 = vmatpush2.msra.mxu0 0.0
    %295 = vmatprep.subr.mxu0 0.0
    %296 = vmatpush2.msra.mxu0 0.0
    %297 = vmatprep.subr.mxu0 0.0
    %298 = vmatpush2.msra.mxu0 0.0
    %299 = vmatprep.subr.mxu0 0.0
    %300 = vmatpush2.msra.mxu0 0.0
    %301 = vmatprep.mubr.f32.mxu0 0.0
    %302 = vmatmul.mubr.f32.gmra.mxu0 %v235
    %v303 = vpop.f32.mrf.mxu0
    %v304 = vadd.f32 %v232, %v303
    %v305 = vpop.f32.mrf.mxu0
    %306 = vdwg.mxu0
    %vm307 = vcmask 31744
    %v308 = vsel %vm307, %v304, -inf
    %309 = vmax.xlane.f32.xlu0 %v308
    %v310 = vpop.xlane.xlu0 %309
    %v311 = vsub.f32 %v304, %v310
    %v312 = vmul.f32 %v311, 1.442695
    %v313 = vpow.pop %v312
    %v314 = vsel %vm307, %v313, 0.0
    %315 = vadd.xlane.f32.xlu0 %v314
    %v316 = vpop.xlane.xlu0 %315
    %v317 = vrcp.pop %v316
    %v318 = vmul.f32 %v313, %v317
    %319 = vst.msk [vmem:[%s7] sm:$0xff] %vm307, %v318
    // Predicated region
    $region38: #{tpu_custom_call.1} parent=1 // pred_check
      _
    $region39: #{tpu_custom_call.1} parent=1 // pred_check_branch
      %321 = sbr.rel (0) target = $region41
    $region40: #{tpu_custom_call.1} parent=1 // pred_region
      _
    $region41: #{tpu_custom_call.1} parent=1 // pred_fallthru
      _
    // Predicated region
    $region42: #{tpu_custom_call.1} parent=1 // pred_check
      _
    $region43: #{tpu_custom_call.1} parent=1 // pred_check_branch
      %323 = sbr.rel (0) target = $region45
    $region44: #{tpu_custom_call.1} parent=1 // pred_region
      _
    $region45: #{tpu_custom_call.1} parent=1 // pred_fallthru
      _
    %324 = vsyncpa [#allocation3], 1
    %325 = vsyncpa [#allocation5], 1

</llo_original>
